<compile_context>
chip_gen: v5e
topology: v5e:2x2
jax: 0.10.0
libtpu: 0.0.40
codegen_flags: <defaults>
</compile_context>

<pallas_src>
import math

import jax
import jax.numpy as jnp
from jax.experimental import pallas as pl
from jax.experimental.pallas import tpu as pltpu


def _cdiv(a, b):
    return (a + b - 1) // b


def _round_up(a, b):
    return _cdiv(a, b) * b


def _sinpos_kernel(pos_ref, expand_ref, const_ref, o_ref):
    # pos_ref:    (k, TB)   f32  token (row*k + g) of this tile lives at pos_ref[g, row];
    #                            0.0 => padding token / tail padding.
    # expand_ref: (k, kd)   f32  expand[g, j] = 1.0 iff j // D == g  (one-hot group matrix)
    # const_ref:  (2, kd)   f32  row 0 = freq (tiled k times), row 1 = phase (0 or pi/2)
    # o_ref:      (TB, kd)  f32  lane-dense packed output (k tokens per row)
    #
    # Expand the k per-token scalars into k contiguous D-lane groups on the idle MXU.
    # Contracting LHS axis 0 keeps pos in its compact (k, TB) layout (no transpose copy).
    pos = jax.lax.dot_general(
        pos_ref[...], expand_ref[...],
        dimension_numbers=(((0,), (0,)), ((), ())),
        precision=jax.lax.Precision.HIGHEST,          # exact selection for positions > 256
        preferred_element_type=jnp.float32)            # (TB, kd)
    # cos(x) == sin(x + pi/2): one transcendental per element.
    # NOTE: for very large positions (>~1e4) the +pi/2 add loses low bits before range
    # reduction; acceptable here (matches reference to ~1e-5 for realistic seq lengths).
    angle = pos * const_ref[0:1, :] + const_ref[1:2, :]
    # Real positions are >= 1 (padding_idx >= 0 assumed); pad sentinel is 0.0 -> zero lanes.
    o_ref[...] = jnp.where(pos > 0.5, jnp.sin(angle), 0.0).astype(o_ref.dtype)


def sinusoidal_positional_embedding(x, embed_dim, padding_idx):
    bsz, seq_len = x.shape
    n = bsz * seq_len
    half = embed_dim // 2

    # Per-column inverse frequency + phase (cos columns use phase pi/2).
    # NOTE: like the reference, this divides by zero if embed_dim in (2, 3).
    scale = math.log(10000.0) / (half - 1)
    freq_half = jnp.exp(-scale * jnp.arange(half, dtype=jnp.float32))
    freq_d = jnp.concatenate([freq_half, freq_half])
    phase_d = jnp.concatenate([jnp.zeros((half,), jnp.float32),
                               jnp.full((half,), math.pi / 2, jnp.float32)])
    if embed_dim % 2 == 1:
        zero = jnp.zeros((1,), jnp.float32)
        freq_d = jnp.concatenate([freq_d, zero])
        phase_d = jnp.concatenate([phase_d, zero])

    # Lane-packing factor: kd = k * embed_dim is always a multiple of 128 -> unmasked vst.
    k = 128 // math.gcd(embed_dim, 128)
    if k > 1 and k * embed_dim > 4096:
        # TODO(synk): pathologically 128-unfriendly embed_dim -> fall back to masked stores
        k = 1
    kd = k * embed_dim

    const = jnp.stack([jnp.tile(freq_d, k), jnp.tile(phase_d, k)], axis=0)          # (2, kd)
    grp = jnp.arange(kd, dtype=jnp.int32) // embed_dim
    expand = (grp[None, :] == jnp.arange(k, dtype=jnp.int32)[:, None]).astype(jnp.float32)

    # Per-token positions (tiny (B,S) glue): i + padding_idx + 1, 0.0 for pad tokens.
    seq_pos = jnp.arange(seq_len, dtype=jnp.float32) + float(padding_idx + 1)
    pos = jnp.where(x != padding_idx, seq_pos[None, :], 0.0).reshape(-1)            # (n,)

    # ---- tile selection -------------------------------------------------------------
    # ~2 MiB output tiles amortize the per-grid-step overhead; split chosen to minimize
    # tail padding; >= 2 grid steps when there is enough work (both v7x TCs busy).
    n_packed = _cdiv(n, k)
    TARGET_TILE_BYTES = 2 * 1024 * 1024
    if n_packed <= 128:
        num_tiles = 1
        block_p = n_packed            # single exact block: no partial blocks anywhere
    else:
        target_rows = max(128, (TARGET_TILE_BYTES // (kd * 4)) // 128 * 128)
        num_tiles = max(2, _cdiv(n_packed, target_rows))
        block_p = _round_up(_cdiv(n_packed, num_tiles), 128)
        num_tiles = _cdiv(n_packed, block_p)

    # Pad only the (tiny) position input; the output stays unpadded and Pallas clips the
    # writeback of the partial last block, so no post-call slice copy of the big output.
    n_pos = num_tiles * block_p * k
    if n_pos > n:
        pos = jnp.concatenate([pos, jnp.zeros((n_pos - n,), jnp.float32)])
    pos_t = pos.reshape(num_tiles * block_p, k).T                                    # (k, nt*bp)

    # Double-buffered VMEM footprint (out + pos) + constants, with 2x headroom.
    vmem_est = (2 * block_p * kd * 4
                + 2 * _round_up(k, 8) * block_p * 4
                + _round_up(k, 8) * kd * 4
                + 8 * kd * 4)
    vmem_limit = int(min(64 * 2**20, max(32 * 2**20, 2 * vmem_est)))

    out = pl.pallas_call(
        _sinpos_kernel,
        out_shape=jax.ShapeDtypeStruct((n_packed, kd), jnp.float32),
        grid_spec=pltpu.PrefetchScalarGridSpec(
            num_scalar_prefetch=0,
            grid=(num_tiles,),
            in_specs=[
                pl.BlockSpec((k, block_p), lambda i: (0, i)),
                pl.BlockSpec((k, kd), lambda i: (0, 0)),   # constant block index -> fetched once
                pl.BlockSpec((2, kd), lambda i: (0, 0)),   # constant block index -> fetched once
            ],
            out_specs=pl.BlockSpec((block_p, kd), lambda i: (i, 0)),
        ),
        compiler_params=pltpu.CompilerParams(
            dimension_semantics=("parallel",),
            vmem_limit_bytes=vmem_limit),
    )(pos_t, expand, const)

    # (n_packed, k*D) has the same flat layout as (n_packed*k, D): a pure bitcast reshape
    # when k | n. The [:n] slice only triggers when k does not divide n (< k extra rows).
    flat = out.reshape(n_packed * k, embed_dim)
    if n_packed * k != n:
        flat = flat[:n]
    return flat.reshape(bsz, seq_len, embed_dim)


def _reference(x, embed_dim, padding_idx):
    # pure-JAX reproduction of the PyTorch semantics (table build + gather)
    bsz, seq_len = x.shape
    max_pos = padding_idx + 1 + seq_len
    half = embed_dim // 2
    scale = math.log(10000.0) / (half - 1)
    freq = jnp.exp(-scale * jnp.arange(half, dtype=jnp.float32))
    tbl_pos = jnp.arange(max_pos, dtype=jnp.float32)[:, None] * freq[None, :]
    tbl = jnp.concatenate([jnp.sin(tbl_pos), jnp.cos(tbl_pos)], axis=1)
    if embed_dim % 2 == 1:
        tbl = jnp.concatenate([tbl, jnp.zeros((max_pos, 1), jnp.float32)], axis=1)
    tbl = tbl.at[padding_idx, :].set(0.0)
    mask = (x != padding_idx)
    range_buf = jnp.arange(seq_len, dtype=jnp.int32)[None, :] + padding_idx + 1
    positions = jnp.where(mask, jnp.broadcast_to(range_buf, x.shape), padding_idx)
    return tbl[positions.reshape(-1)].reshape(bsz, seq_len, embed_dim)


def _run_case(key, bsz, seq_len, embed_dim, padding_idx):
    x = jax.random.randint(key, (bsz, seq_len), 0, 10, dtype=jnp.int32)
    # make sure there are some padding tokens
    x = x.at[0, 0].set(padding_idx)
    x = x.at[-1, seq_len // 2].set(padding_idx)

    out = sinusoidal_positional_embedding(x, embed_dim, padding_idx)
    out = jax.block_until_ready(out)

    ref = _reference(x, embed_dim, padding_idx)
    assert out.shape == (bsz, seq_len, embed_dim), out.shape
    assert out.dtype == jnp.float32
    assert jnp.allclose(out, ref, atol=1e-5), f"mismatch vs reference for {(bsz, seq_len, embed_dim)}"


if __name__ == "__main__":
    key = jax.random.PRNGKey(0)
    k1, k2 = jax.random.split(key)
    # small canonical shape (single exact block path)
    _run_case(k1, bsz=2, seq_len=8, embed_dim=32, padding_idx=1)
    # exercises the multi-tile grid + clipped partial last output block
    _run_case(k2, bsz=4, seq_len=100, embed_dim=64, padding_idx=1)
    print("KERNEL_OK")
</pallas_src>

<mosaic_0001>
module attributes {stable_mosaic.version = 11 : i64} {
  func.func @_sinpos_kernel(%arg0: i32, %arg1: memref<4x4xf32, #tpu.memory_space<vmem>>, %arg2: memref<4x128xf32, #tpu.memory_space<vmem>>, %arg3: memref<2x128xf32, #tpu.memory_space<vmem>>, %arg4: memref<4x128xf32, #tpu.memory_space<vmem>>) attributes {dimension_semantics = [#tpu.dimension_semantics<parallel>], iteration_bounds = array<i64: 1>, scalar_prefetch = 0 : i64, scratch_operands = 0 : i64, tpu.core_type = #tpu.core_type<tc>, window_params = [{transform_indices = @transform_0, window_bounds = array<i64: 4, 4>}, {pipeline_mode = #tpu.pipeline_mode<synchronous>, transform_indices = @transform_1, window_bounds = array<i64: 4, 128>}, {pipeline_mode = #tpu.pipeline_mode<synchronous>, transform_indices = @transform_2, window_bounds = array<i64: 2, 128>}, {transform_indices = @transform_3, window_bounds = array<i64: 4, 128>}]} {
    %c0 = arith.constant 0 : index
    %c0_0 = arith.constant 0 : index
    %0 = vector.load %arg1[%c0, %c0_0] : memref<4x4xf32, #tpu.memory_space<vmem>>, vector<4x4xf32>
    %c0_1 = arith.constant 0 : index
    %c0_2 = arith.constant 0 : index
    %1 = vector.load %arg2[%c0_1, %c0_2] : memref<4x128xf32, #tpu.memory_space<vmem>>, vector<4x128xf32>
    %cst = arith.constant dense<0.000000e+00> : vector<4x128xf32>
    %2 = tpu.matmul %0, %1, %cst {dimension_numbers = #tpu.dot_dimension_numbers<[0], [0], [1], [1], [0, 1, 1, 1], [], []>, precision = #tpu.contract_precision<fp32>} : vector<4x4xf32>, vector<4x128xf32>, vector<4x128xf32> -> vector<4x128xf32>
    %c0_3 = arith.constant 0 : index
    %c0_4 = arith.constant 0 : index
    %3 = vector.load %arg3[%c0_3, %c0_4] : memref<2x128xf32, #tpu.memory_space<vmem>>, vector<1x128xf32>
    %4 = vector.broadcast %3 : vector<1x128xf32> to vector<4x128xf32>
    %5 = arith.mulf %2, %4 : vector<4x128xf32>
    %c1 = arith.constant 1 : index
    %c0_5 = arith.constant 0 : index
    %6 = vector.load %arg3[%c1, %c0_5] : memref<2x128xf32, #tpu.memory_space<vmem>>, vector<1x128xf32>
    %7 = vector.broadcast %6 : vector<1x128xf32> to vector<4x128xf32>
    %8 = arith.addf %5, %7 : vector<4x128xf32>
    %cst_6 = arith.constant 5.000000e-01 : f32
    %9 = vector.broadcast %cst_6 : f32 to vector<4x128xf32>
    %10 = arith.cmpf ogt, %2, %9 : vector<4x128xf32>
    %11 = math.sin %8 : vector<4x128xf32>
    %cst_7 = arith.constant 0.000000e+00 : f32
    %12 = vector.broadcast %cst_7 : f32 to vector<4x128xf32>
    %13 = arith.select %10, %11, %12 : vector<4x128xi1>, vector<4x128xf32>
    %c0_8 = arith.constant 0 : index
    %c0_9 = arith.constant 0 : index
    %14 = vector.load %arg4[%c0_8, %c0_9] : memref<4x128xf32, #tpu.memory_space<vmem>>, vector<4x128xf32>
    tpu.vector_store %arg4[%c0_8, %c0_9], %13 {strides = array<i32>} : memref<4x128xf32, #tpu.memory_space<vmem>>, vector<4x128xf32>,
    return
  }
  func.func @transform_0(%arg0: i32) -> (i32, i32) {
    %c0_i32 = arith.constant 0 : i32
    %c0_i32_0 = arith.constant 0 : i32
    return %c0_i32, %arg0 : i32, i32
  }
  func.func @transform_1(%arg0: i32) -> (i32, i32) {
    %c0_i32 = arith.constant 0 : i32
    %c0_i32_0 = arith.constant 0 : i32
    %c0_i32_1 = arith.constant 0 : i32
    return %c0_i32, %c0_i32_0 : i32, i32
  }
  func.func @transform_2(%arg0: i32) -> (i32, i32) {
    %c0_i32 = arith.constant 0 : i32
    %c0_i32_0 = arith.constant 0 : i32
    %c0_i32_1 = arith.constant 0 : i32
    return %c0_i32, %c0_i32_0 : i32, i32
  }
  func.func @transform_3(%arg0: i32) -> (i32, i32) {
    %c0_i32 = arith.constant 0 : i32
    %c0_i32_0 = arith.constant 0 : i32
    return %arg0, %c0_i32 : i32, i32
  }
}

</mosaic_0001>

<llo_original>
// kernel: tpu_custom_call.1
$region0: #{tpu_custom_call.1}
  #allocation0 [shape = 'u32[]', space=smem, size = 0x4, offset = 0x4, fixed_abs, tag = 'smem constant byte address 0x4 - core index']
  #allocation1 [shape = 'u32[72,128]{1,0:T(1,128)}', space=vmem, size = 0x9000, scoped, tag = 'internal scratch']
  %s0 = inlined_call_operand.hbm [shape: f32[4,4], index: 0, kind: input, shape index: {}]
  %s1 = inlined_call_operand.hbm [shape: f32[4,128], index: 1, kind: input, shape index: {}]
  %s2 = inlined_call_operand.hbm [shape: f32[2,128], index: 2, kind: input, shape index: {}]
  %s3 = inlined_call_operand.hbm [shape: f32[4,128], index: 3, kind: output, shape index: {}]
  %s4 = sld [smem:[#allocation0]]
  $region34: #{tpu_custom_call.1} parent=0
    _
  %s6 = ssub.s32 1, %s4
  %s7 = scalar_select 0, %s6, %s4
  $region1: #{tpu_custom_call.1} parent=0
    #allocation2 [shape = 'u8[2048]{0}', space=vmem, size = 0x800, scoped, tag = 'input window, operand 0, single buffered']
    #allocation3 [shape = 's32[1]{0}', space=sflag, size = 0x4, scoped, tag = 'scoped memory for tpu_custom_call.1']
    #allocation4 [shape = 's32[1]{0}', space=sflag, size = 0x4, scoped, tag = 'scoped memory for tpu_custom_call.1']
    #allocation5 [shape = 'u8[2048]{0}', space=vmem, size = 0x800, scoped, tag = 'input window, operand 1, single buffered']
    #allocation6 [shape = 's32[1]{0}', space=sflag, size = 0x4, scoped, tag = 'scoped memory for tpu_custom_call.1']
    #allocation7 [shape = 'u8[1024]{0}', space=vmem, size = 0x400, scoped, tag = 'input window, operand 2, single buffered']
    #allocation8 [shape = 'u8[2048]{0}', space=vmem, size = 0x800, scoped, tag = 'output window, operand 0, single buffered']
    %8 = vsyncpa [#allocation3], 0
    %9 = vsyncpa [#allocation6], 0
    %10 = vsyncpa [#allocation4], 0
    // Predicated region
    $region2: #{tpu_custom_call.1} parent=1 // pred_check
      _
    $region3: #{tpu_custom_call.1} parent=1 // pred_check_branch
      %12 = sbr.rel (0) target = $region5
    $region4: #{tpu_custom_call.1} parent=1 // pred_region
      %14 = vsyncadd [#allocation3], 0
      %s16 = sshll.u32 %s0, 4
      %s17 = int_to_ptr.hbm [resolvable:$true] %s16
      %s18 = sshll.u32 [#allocation2], 4
      %s19 = int_to_ptr.vmem [resolvable:$true] %s18
      %21 = dma.hbm_to_vmem [thread:$0]  %s17, 64, %s19, [#allocation3]
    $region5: #{tpu_custom_call.1} parent=1 // pred_fallthru
      _
    // Predicated region
    $region6: #{tpu_custom_call.1} parent=1 // pred_check
      _
    $region7: #{tpu_custom_call.1} parent=1 // pred_check_branch
      %23 = sbr.rel (0) target = $region9
    $region8: #{tpu_custom_call.1} parent=1 // pred_region
      %25 = vsyncadd [#allocation6], 0
      %s27 = sshll.u32 %s1, 4
      %s28 = int_to_ptr.hbm [resolvable:$true] %s27
      %s29 = sshll.u32 [#allocation5], 4
      %s30 = int_to_ptr.vmem [resolvable:$true] %s29
      %32 = dma.hbm_to_vmem [thread:$0]  %s28, 64, %s30, [#allocation6]
    $region9: #{tpu_custom_call.1} parent=1 // pred_fallthru
      _
    // Predicated region
    $region10: #{tpu_custom_call.1} parent=1 // pred_check
      _
    $region11: #{tpu_custom_call.1} parent=1 // pred_check_branch
      %34 = sbr.rel (0) target = $region13
    $region12: #{tpu_custom_call.1} parent=1 // pred_region
      %36 = vsyncadd [#allocation6], 0
      %s38 = sshll.u32 %s2, 4
      %s39 = int_to_ptr.hbm [resolvable:$true] %s38
      %s40 = sshll.u32 [#allocation7], 4
      %s41 = int_to_ptr.vmem [resolvable:$true] %s40
      %43 = dma.hbm_to_vmem [thread:$0]  %s39, 32, %s41, [#allocation6]
    $region13: #{tpu_custom_call.1} parent=1 // pred_fallthru
      _
    // Predicated region
    $region14: #{tpu_custom_call.1} parent=1 // pred_check
      _
    $region15: #{tpu_custom_call.1} parent=1 // pred_check_branch
      %45 = sbr.rel (0) target = $region17
    $region16: #{tpu_custom_call.1} parent=1 // pred_region
      %47 = dma.done [#allocation3], 64
    $region17: #{tpu_custom_call.1} parent=1 // pred_fallthru
      _
    // Predicated region
    $region18: #{tpu_custom_call.1} parent=1 // pred_check
      _
    $region19: #{tpu_custom_call.1} parent=1 // pred_check_branch
      %49 = sbr.rel (0) target = $region21
    $region20: #{tpu_custom_call.1} parent=1 // pred_region
      %51 = dma.done [#allocation6], 64
    $region21: #{tpu_custom_call.1} parent=1 // pred_fallthru
      _
    // Predicated region
    $region22: #{tpu_custom_call.1} parent=1 // pred_check
      _
    $region23: #{tpu_custom_call.1} parent=1 // pred_check_branch
      %53 = sbr.rel (0) target = $region25
    $region24: #{tpu_custom_call.1} parent=1 // pred_region
      %55 = dma.done [#allocation6], 32
    $region25: #{tpu_custom_call.1} parent=1 // pred_fallthru
      _
    %v56 = vld [vmem:[#allocation2] sm:$0xf]
    %v57 = vld [vmem:[#allocation5] sm:$0xf]
    %58 = vxpose.xlu0.b32.start [1/16] %v56, 128
    %59 = vxpose.xlu0.b32.cont [2/16] 0.0, 128
    %60 = vxpose.xlu0.b32.cont [3/16] 0.0, 128
    %61 = vxpose.xlu0.b32.cont [4/16] 0.0, 128
    %62 = vxpose.xlu0.b32.cont [5/16] 0.0, 128
    %63 = vxpose.xlu0.b32.cont [6/16] 0.0, 128
    %64 = vxpose.xlu0.b32.cont [7/16] 0.0, 128
    %65 = vxpose.xlu0.b32.cont [8/16] 0.0, 128
    %66 = vxpose.xlu0.b32.cont [9/16] 0.0, 128
    %67 = vxpose.xlu0.b32.cont [10/16] 0.0, 128
    %68 = vxpose.xlu0.b32.cont [11/16] 0.0, 128
    %69 = vxpose.xlu0.b32.cont [12/16] 0.0, 128
    %70 = vxpose.xlu0.b32.cont [13/16] 0.0, 128
    %71 = vxpose.xlu0.b32.cont [14/16] 0.0, 128
    %72 = vxpose.xlu0.b32.cont [15/16] 0.0, 128
    %73 = vxpose.xlu0.b32.end [16/16] 0.0, 128
    %v74 = vpop.trf.xlu0
    %v75 = vpop.trf.xlu0
    %v76 = vpop.trf.xlu0
    %v77 = vpop.trf.xlu0
    %v78 = vpop.trf.xlu0
    %v79 = vpop.trf.xlu0
    %v80 = vpop.trf.xlu0
    %v81 = vpop.trf.xlu0
    %v82 = vpop.trf.xlu0
    %v83 = vpop.trf.xlu0
    %v84 = vpop.trf.xlu0
    %v85 = vpop.trf.xlu0
    %v86 = vpop.trf.xlu0
    %v87 = vpop.trf.xlu0
    %v88 = vpop.trf.xlu0
    %v89 = vpop.trf.xlu0
    %vm90 = vcmask 31744
    %v92 = vsel %vm90, %v74, 0
    %vm94 = vcmask 1043456
    %v96 = vsel %vm94, %v57, 0
    %98 = vmatpush.msra.mxu0 0.0
    %99 = vmatpush.msra.mxu0 0.0
    %100 = vmatpush.msra.mxu0 0.0
    %101 = vmatpush.msra.mxu0 0.0
    %102 = vmatpush.msra.mxu0 0.0
    %103 = vmatpush.msra.mxu0 0.0
    %104 = vmatpush.msra.mxu0 0.0
    %105 = vmatpush.msra.mxu0 0.0
    %106 = vmatpush.msra.mxu0 0.0
    %107 = vmatpush.msra.mxu0 0.0
    %108 = vmatpush.msra.mxu0 0.0
    %109 = vmatpush.msra.mxu0 0.0
    %110 = vmatpush.msra.mxu0 0.0
    %111 = vmatpush.msra.mxu0 0.0
    %112 = vmatpush.msra.mxu0 0.0
    %v113 = vand.u32 %v96, 4294901760
    %114 = vmatpush.msra.mxu0 %v113
    %v115 = vand.u32 %v92, 4294901760
    %v116 = vsub.f32 %v92, %v115
    %v117 = vand.u32 %v116, 4294901760
    %v118 = vsub.f32 %v116, %v117
    %v119 = vand.u32 %v118, 4294901760
    %120 = vmatmul.f32.gmra.mxu0 %v119
    %v121 = vpop.f32.mrf.mxu0
    %v122 = vadd.f32 0.0, %v121
    %123 = vdwg.mxu0
    %124 = vmatpush.msra.mxu0 0.0
    %125 = vmatpush.msra.mxu0 0.0
    %126 = vmatpush.msra.mxu0 0.0
    %127 = vmatpush.msra.mxu0 0.0
    %128 = vmatpush.msra.mxu0 0.0
    %129 = vmatpush.msra.mxu0 0.0
    %130 = vmatpush.msra.mxu0 0.0
    %131 = vmatpush.msra.mxu0 0.0
    %132 = vmatpush.msra.mxu0 0.0
    %133 = vmatpush.msra.mxu0 0.0
    %134 = vmatpush.msra.mxu0 0.0
    %135 = vmatpush.msra.mxu0 0.0
    %136 = vmatpush.msra.mxu0 0.0
    %137 = vmatpush.msra.mxu0 0.0
    %138 = vmatpush.msra.mxu0 0.0
    %v139 = vand.u32 %v96, 4294901760
    %v140 = vsub.f32 %v96, %v139
    %v141 = vand.u32 %v140, 4294901760
    %v142 = vsub.f32 %v140, %v141
    %v143 = vand.u32 %v142, 4294901760
    %144 = vmatpush.msra.mxu0 %v143
    %v145 = vand.u32 %v92, 4294901760
    %146 = vmatmul.f32.gmra.mxu0 %v145
    %v147 = vpop.f32.mrf.mxu0
    %v148 = vadd.f32 %v122, %v147
    %149 = vdwg.mxu0
    %150 = vmatpush.msra.mxu0 0.0
    %151 = vmatpush.msra.mxu0 0.0
    %152 = vmatpush.msra.mxu0 0.0
    %153 = vmatpush.msra.mxu0 0.0
    %154 = vmatpush.msra.mxu0 0.0
    %155 = vmatpush.msra.mxu0 0.0
    %156 = vmatpush.msra.mxu0 0.0
    %157 = vmatpush.msra.mxu0 0.0
    %158 = vmatpush.msra.mxu0 0.0
    %159 = vmatpush.msra.mxu0 0.0
    %160 = vmatpush.msra.mxu0 0.0
    %161 = vmatpush.msra.mxu0 0.0
    %162 = vmatpush.msra.mxu0 0.0
    %163 = vmatpush.msra.mxu0 0.0
    %164 = vmatpush.msra.mxu0 0.0
    %v165 = vand.u32 %v96, 4294901760
    %v166 = vsub.f32 %v96, %v165
    %167 = vmatpush.msra.mxu0 %v166
    %v168 = vand.u32 %v92, 4294901760
    %v169 = vsub.f32 %v92, %v168
    %170 = vmatmul.f32.gmra.mxu0 %v169
    %v171 = vpop.f32.mrf.mxu0
    %v172 = vadd.f32 %v148, %v171
    %173 = vdwg.mxu0
    %174 = vmatpush.msra.mxu0 0.0
    %175 = vmatpush.msra.mxu0 0.0
    %176 = vmatpush.msra.mxu0 0.0
    %177 = vmatpush.msra.mxu0 0.0
    %178 = vmatpush.msra.mxu0 0.0
    %179 = vmatpush.msra.mxu0 0.0
    %180 = vmatpush.msra.mxu0 0.0
    %181 = vmatpush.msra.mxu0 0.0
    %182 = vmatpush.msra.mxu0 0.0
    %183 = vmatpush.msra.mxu0 0.0
    %184 = vmatpush.msra.mxu0 0.0
    %185 = vmatpush.msra.mxu0 0.0
    %186 = vmatpush.msra.mxu0 0.0
    %187 = vmatpush.msra.mxu0 0.0
    %188 = vmatpush.msra.mxu0 0.0
    %v189 = vand.u32 %v96, 4294901760
    %190 = vmatpush.msra.mxu0 %v189
    %v191 = vand.u32 %v92, 4294901760
    %v192 = vsub.f32 %v92, %v191
    %v193 = vand.u32 %v192, 4294901760
    %194 = vmatmul.f32.gmra.mxu0 %v193
    %v195 = vpop.f32.mrf.mxu0
    %v196 = vadd.f32 %v172, %v195
    %197 = vdwg.mxu0
    %198 = vmatpush.msra.mxu0 0.0
    %199 = vmatpush.msra.mxu0 0.0
    %200 = vmatpush.msra.mxu0 0.0
    %201 = vmatpush.msra.mxu0 0.0
    %202 = vmatpush.msra.mxu0 0.0
    %203 = vmatpush.msra.mxu0 0.0
    %204 = vmatpush.msra.mxu0 0.0
    %205 = vmatpush.msra.mxu0 0.0
    %206 = vmatpush.msra.mxu0 0.0
    %207 = vmatpush.msra.mxu0 0.0
    %208 = vmatpush.msra.mxu0 0.0
    %209 = vmatpush.msra.mxu0 0.0
    %210 = vmatpush.msra.mxu0 0.0
    %211 = vmatpush.msra.mxu0 0.0
    %212 = vmatpush.msra.mxu0 0.0
    %v213 = vand.u32 %v96, 4294901760
    %v214 = vsub.f32 %v96, %v213
    %v215 = vand.u32 %v214, 4294901760
    %216 = vmatpush.msra.mxu0 %v215
    %v217 = vand.u32 %v92, 4294901760
    %218 = vmatmul.f32.gmra.mxu0 %v217
    %v219 = vpop.f32.mrf.mxu0
    %v220 = vadd.f32 %v196, %v219
    %221 = vdwg.mxu0
    %222 = vmatpush.msra.mxu0 0.0
    %223 = vmatpush.msra.mxu0 0.0
    %224 = vmatpush.msra.mxu0 0.0
    %225 = vmatpush.msra.mxu0 0.0
    %226 = vmatpush.msra.mxu0 0.0
    %227 = vmatpush.msra.mxu0 0.0
    %228 = vmatpush.msra.mxu0 0.0
    %229 = vmatpush.msra.mxu0 0.0
    %230 = vmatpush.msra.mxu0 0.0
    %231 = vmatpush.msra.mxu0 0.0
    %232 = vmatpush.msra.mxu0 0.0
    %233 = vmatpush.msra.mxu0 0.0
    %234 = vmatpush.msra.mxu0 0.0
    %235 = vmatpush.msra.mxu0 0.0
    %236 = vmatpush.msra.mxu0 0.0
    %v237 = vand.u32 %v96, 4294901760
    %238 = vmatpush.msra.mxu0 %v237
    %v239 = vand.u32 %v92, 4294901760
    %240 = vmatmul.f32.gmra.mxu0 %v239
    %v241 = vpop.f32.mrf.mxu0
    %v242 = vadd.f32 %v220, %v241
    %243 = vdwg.mxu0
    %v244 = vld [vmem:[#allocation7] sm:$0x1]
    %v245 = vperm.slane %v244, 0
    %v246 = vmul.f32 %v242, %v245
    %v247 = vld [vmem:[#allocation7 + $0x1] sm:$0x1]
    %v248 = vperm.slane %v247, 0
    %v249 = vadd.f32 %v246, %v248
    %vm250 = vcmp.gt.f32.partialorder %v242, 0.5
    %v251 = vand.u32 2147483647, %v249
    %vm252 = vcmp.le.f32.partialorder %v251, 0.7853982
    %vm253 = vcmp.lt.s32.totalorder %v249, 0
    %v254 = vand.u32 %v249, 2139095040
    %v255 = vshrl.u32 %v254, 23
    %v256 = vsub.s32 %v255, 127
    %v257 = vand.u32 2147483647, %v249
    %v258 = vand.u32 %v257, 8388607
    %v259 = vor.u32 %v258, 8388608
    %v260 = vsub.s32 0, %v259
    %v261 = vadd.s32 %v256, 1
    %vm262 = vcmp.gt.s32.totalorder %v261, 0
    %v263 = vsel %vm262, %v261, 0
    %v264 = vshrl.u32 %v263, 5
    %v265 = vand.u32 %v263, 31
    %v266 = vsub.s32 32, %v265
    %v267 = vshrl.u32 683565275, %v266
    %v268 = vshll.u32 683565275, %v265
    %v269 = vshrl.u32 2475754826, %v266
    %v270 = vor.u32 %v268, %v269
    %v271 = vshll.u32 2475754826, %v265
    %v272 = vshrl.u32 2131351028, %v266
    %v273 = vor.u32 %v271, %v272
    %v274 = vshll.u32 2131351028, %v265
    %v275 = vshrl.u32 2102212464, %v266
    %v276 = vor.u32 %v274, %v275
    %v277 = vshll.u32 2102212464, %v265
    %v278 = vshrl.u32 920167782, %v266
    %v279 = vor.u32 %v277, %v278
    %v280 = vshll.u32 920167782, %v265
    %v281 = vshrl.u32 1326507024, %v266
    %v282 = vor.u32 %v280, %v281
    %vm283 = vcmp.lt.s32.totalorder %v264, 1
    %vm284 = vcmp.lt.s32.totalorder %v264, 2
    %vm285 = vcmp.lt.s32.totalorder %v264, 3
    %vm286 = vcmp.lt.s32.totalorder %v264, 4
    %v287 = vsel %vm283, %v267, %v270
    %v288 = vsel %vm286, %v276, 2102212464
    %v289 = vsel %vm285, %v273, %v288
    %v290 = vsel %vm284, %v287, %v289
    %v291 = vsel %vm283, %v270, %v273
    %v292 = vsel %vm286, %v279, 920167782
    %v293 = vsel %vm285, %v276, %v292
    %v294 = vsel %vm284, %v291, %v293
    %v295 = vsel %vm283, %v273, %v276
    %v296 = vsel %vm286, %v282, 1326507024
    %v297 = vsel %vm285, %v279, %v296
    %v298 = vsel %vm284, %v295, %v297
    %v299 = vshll.u32 %v259, 8
    %v300 = vand.u32 %v299, 65535
    %v301 = vshrl.u32 %v299, 16
    %v302 = vand.u32 %v298, 65535
    %v303 = vshrl.u32 %v298, 16
    %v304 = vmul.u32 %v300, %v302
    %v305 = vmul.u32 %v300, %v303
    %v306 = vmul.u32 %v301, %v302
    %v307 = vmul.u32 %v301, %v303
    %v308 = vshll.u32 %v305, 16
    %v309 = vshrl.u32 %v305, 16
    %v310 = vshll.u32 %v306, 16
    %v311 = vshrl.u32 %v306, 16
    %vm312 = vc.u32 %v304, %v308
    %v313 = vsel %vm312, 1, 0
    %v314 = vadd.s32 %v304, %v308
    %v315 = vadd.s32 %v307, %v313
    %vm316 = vc.u32 %v314, %v310
    %v317 = vsel %vm316, 1, 0
    %v318 = vadd.s32 %v314, %v310
    %v319 = vadd.s32 %v315, %v317
    %v320 = vadd.s32 %v319, %v309
    %v321 = vadd.s32 %v320, %v311
    %v322 = vand.u32 %v299, 65535
    %v323 = vshrl.u32 %v299, 16
    %v324 = vand.u32 %v294, 65535
    %v325 = vshrl.u32 %v294, 16
    %v326 = vmul.u32 %v322, %v324
    %v327 = vmul.u32 %v322, %v325
    %v328 = vmul.u32 %v323, %v324
    %v329 = vmul.u32 %v323, %v325
    %v330 = vshll.u32 %v327, 16
    %v331 = vshrl.u32 %v327, 16
    %v332 = vshll.u32 %v328, 16
    %v333 = vshrl.u32 %v328, 16
    %vm334 = vc.u32 %v326, %v330
    %v335 = vsel %vm334, 1, 0
    %v336 = vadd.s32 %v326, %v330
    %v337 = vadd.s32 %v329, %v335
    %vm338 = vc.u32 %v336, %v332
    %v339 = vsel %vm338, 1, 0
    %v340 = vadd.s32 %v336, %v332
    %v341 = vadd.s32 %v337, %v339
    %v342 = vadd.s32 %v341, %v331
    %v343 = vadd.s32 %v342, %v333
    %v344 = vmul.u32 %v299, %v290
    %v345 = vadd.s32 %v321, %v340
    %vm346 = vc.u32 %v321, %v340
    %v347 = vadd.s32 %v343, 1
    %v348 = vsel %vm346, %v347, %v343
    %v349 = vadd.s32 %v344, %v348
    %v350 = vadd.s32 %v349, 536870912
    %v351 = vshrl.u32 %v350, 30
    %v352 = vshll.u32 %v351, 30
    %v353 = vsub.s32 %v349, %v352
    %vm354 = vcmp.lt.s32.totalorder %v353, 0
    %v355 = vsub.s32 0, %v353
    %v356 = vsel %vm354, %v355, %v353
    %v357 = vclz %v356
    %v358 = vsub.s32 %v357, 2
    %vm359 = vcmp.gt.s32.totalorder 0, %v358
    %v360 = vsel %vm359, 0, %v358
    %v361 = vsub.s32 32, %v360
    %v362 = vshll.u32 %v353, %v360
    %v363 = vshrl.u32 %v345, %v361
    %v364 = vor.u32 %v362, %v363
    %v365 = vsub.s32 4294967266, %v360
    %v366 = vadd.s32 %v365, 127
    %v367 = vshll.u32 %v366, 23
    %v368 = vor.u32 4788187, %v367
    %v369 = vand.u32 2147483647, %v368
    %v371 = vcvt.s32.f32 %v364
    %v372 = vmul.f32 %v371, %v369
    %v373 = vxor.u32 %v372, 2147483648
    %v374 = vsel %vm253, %v373, %v372
    %v375 = vsub.s32 4, %v351
    %v376 = vsel %vm253, %v375, %v351
    %v377 = vsel %vm252, %v249, %v374
    %v378 = vsel %vm252, 0, %v376
    %v379 = vmul.f32 %v377, %v377
    %v380 = vmul.f32 %v379, -0.001358992
    %v381 = vadd.f32 %v380, 0.041655596
    %v382 = vmul.f32 %v379, %v381
    %v383 = vadd.f32 %v382, -0.4999988
    %v384 = vmul.f32 %v379, %v383
    %v385 = vadd.f32 1.0, %v384
    %v386 = vmul.f32 %v377, %v377
    %v387 = vmul.f32 %v386, -0.00019511016
    %v388 = vadd.f32 %v387, 0.008332121
    %v389 = vmul.f32 %v386, %v388
    %v390 = vadd.f32 %v389, -0.16666654
    %v391 = vmul.f32 %v386, %v390
    %v392 = vadd.f32 %v391, 1.0
    %v393 = vmul.f32 %v392, %v377
    %vm394 = vweird.f32 %v249
    %v395 = vadd.s32 %v378, 3
    %v396 = vand.u32 %v395, 3
    %vm397 = vcmp.lt.s32.totalorder %v396, 2
    %vm398 = vcmp.eq.s32.totalorder %v396, 0
    %v399 = vxor.u32 %v393, 2147483648
    %v400 = vsel %vm398, %v385, %v399
    %vm401 = vcmp.eq.s32.totalorder %v396, 2
    %v402 = vxor.u32 %v385, 2147483648
    %v403 = vsel %vm401, %v402, %v393
    %v404 = vsel %vm397, %v400, %v403
    %v405 = vsel %vm394, nan, %v404
    %v406 = vsel %vm250, %v405, 0.0
    %407 = vst [vmem:[#allocation8] sm:$0xf] %v406
    // Predicated region
    $region26: #{tpu_custom_call.1} parent=1 // pred_check
      _
    $region27: #{tpu_custom_call.1} parent=1 // pred_check_branch
      %409 = sbr.rel (0) target = $region29
    $region28: #{tpu_custom_call.1} parent=1 // pred_region
      %411 = vsyncadd [#allocation4], 0
      %s413 = sshll.u32 [#allocation8], 4
      %s414 = int_to_ptr.vmem [resolvable:$true] %s413
      %s415 = sshll.u32 %s3, 4
      %s416 = int_to_ptr.hbm [resolvable:$true] %s415
      %418 = dma.vmem_to_hbm [thread:$0]  %s414, 64, %s416, [#allocation4]
    $region29: #{tpu_custom_call.1} parent=1 // pred_fallthru
      _
    // Predicated region
    $region30: #{tpu_custom_call.1} parent=1 // pred_check
      _
    $region31: #{tpu_custom_call.1} parent=1 // pred_check_branch
      %420 = sbr.rel (0) target = $region33
    $region32: #{tpu_custom_call.1} parent=1 // pred_region
      %422 = dma.done [#allocation4], 64
    $region33: #{tpu_custom_call.1} parent=1 // pred_fallthru
      _
    %423 = vsyncpa [#allocation3], 1
    %424 = vsyncpa [#allocation6], 1
    %425 = vsyncpa [#allocation4], 1

</llo_original>
